<compile_context>
chip_gen: v7x
topology: tpu7x:2x2x1
jax: 0.10.0
libtpu: 0.0.40
codegen_flags: <defaults>
</compile_context>

<pallas_src>
import jax
import jax.numpy as jnp
from jax.experimental import pallas as pl
from jax.experimental.pallas import tpu as pltpu

_LANE = 128
_SUBLANE_BF16 = 16
_SINGLE_BUFFER_THRESHOLD = 4 * 1024 * 1024  # single-buffer w1 above this size


def _round_up(x, m):
    return ((x + m - 1) // m) * m


def _default_vmem_limit_bytes():
    """~100 MiB on v5e/v6e, ~56 MiB on v7x, conservative 48 MiB fallback."""
    try:
        cap = int(getattr(pltpu.get_tpu_info(), "vmem_capacity_bytes"))
    except Exception:
        return 48 * 1024 * 1024
    return int(min(cap - cap // 8, 100 * 1024 * 1024))


def _choose_tiles(B, S_pad, EP, C, x_itemsize, vmem_limit_bytes):
    """Pick (TB, TS, B_pad, G) from an explicit VMEM budget.

    Budget covers: double-buffered x / mask / output tiles, the f32 emb
    intermediate (+1 temp), the f32 accumulator scratch and the resident
    weights, with ~25% headroom for compiler temporaries."""
    budget = int(vmem_limit_bytes * 0.75)

    w1_bytes = EP * EP * x_itemsize
    w1_bufs = 1 if w1_bytes >= _SINGLE_BUFFER_THRESHOLD else 2
    fixed = (w1_bufs * w1_bytes                      # w1 (resident)
             + 2 * (EP * 4 + EP * C * 4 + C * 4))    # b1, w2, b2 (tiny)
    avail = budget - fixed

    def per_row_bytes(ts):
        return (2 * ts * EP * x_itemsize   # x tile (double-buffered)
                + 2 * ts * 4               # mask tile (f32, double-buffered)
                + 2 * C * 4                # output tile (double-buffered)
                + EP * 4                   # f32 accumulator scratch
                + 2 * ts * EP * 4)         # f32 emb intermediate + one temp

    # Largest TS (multiple of 16, divisor of S_pad) that still fits TB=8.
    ts = _SUBLANE_BF16
    for cand in range(_SUBLANE_BF16, S_pad + 1, _SUBLANE_BF16):
        if S_pad % cand == 0 and 8 * per_row_bytes(cand) <= avail:
            ts = cand

    # Largest TB (multiple of 8) that fits the budget ...
    tb_vmem = max(8, (avail // per_row_bytes(ts)) // 8 * 8)
    # ... but keep ~>=4 batch-grid steps when B is big enough, so both v7x
    # TensorCores get >=2 steps each (pipelining + megacore balance).
    b8 = _round_up(B, 8)
    tb_target = max(8, _round_up(-(-b8 // 4), 8))
    tb = int(min(tb_vmem, tb_target))

    b_pad = _round_up(B, tb)
    return tb, ts, b_pad, b_pad // tb


def cls_head_kernel(x_ref, mask_ref, w1_ref, b1_ref, w2_ref, b2_ref,
                    o_ref, acc_ref):
    # x_ref:    (TB, TS, EP) streamed dtype (bf16)
    # mask_ref: (TB, TS, 1)  f32
    # w1_ref:   (EP, EP) streamed dtype ; b1_ref: (1, EP) f32
    # w2_ref:   (EP, C)  f32            ; b2_ref: (1, C)  f32
    # o_ref:    (TB, C)  f32  (written on the last ts step only)
    # acc_ref:  (TB, EP) f32  scratch accumulator over the S axis
    ts = pl.program_id(1)

    @pl.when(ts == 0)
    def _():
        acc_ref[...] = jnp.zeros_like(acc_ref)

    TB, TS, EP = x_ref.shape
    # One fused (TB*TS, EP) @ (EP, EP) MXU matmul, f32 accumulation.
    x2d = x_ref[...].reshape(TB * TS, EP)   # free relayout (TS % 16 == 0)
    emb = jnp.dot(x2d, w1_ref[...], preferred_element_type=jnp.float32)
    emb = jnp.maximum(emb + b1_ref[...], 0.0).reshape(TB, TS, EP)

    # Masked sequence sum: VPU multiply + cross-sublane (XLU) reduce.
    acc_ref[...] += jnp.sum(emb * mask_ref[...], axis=1)

    @pl.when(ts == pl.num_programs(1) - 1)
    def _():
        logits = jnp.dot(acc_ref[...], w2_ref[...],
                         preferred_element_type=jnp.float32) + b2_ref[...]
        o_ref[...] = logits.astype(o_ref.dtype)


def classification_head(x, mask, w1, b1, w2, b2, *,
                        stream_dtype=jnp.bfloat16, vmem_limit_bytes=None):
    """x: (B, S, E), mask: (B, S).
    w1: (E, E) [in, out], b1: (E,), w2: (E, C) [in, out], b2: (C,).
    Returns f32 logits of shape (B, C)."""
    B, S, E = x.shape
    C = w2.shape[1]
    if vmem_limit_bytes is None:
        vmem_limit_bytes = _default_vmem_limit_bytes()

    x_item = jnp.dtype(stream_dtype).itemsize
    EP = _round_up(E, _LANE)              # lane-dense tiles, full MXU columns
    S_pad = _round_up(S, _SUBLANE_BF16)   # free in-kernel reshape for bf16
    TB, TS, B_pad, G = _choose_tiles(B, S_pad, EP, C, x_item, vmem_limit_bytes)
    SG = S_pad // TS

    # Zero padding is exact: padded E columns see zero weights/bias, padded S
    # rows have zero mask, padded B rows are sliced off below.
    xp = jnp.zeros((B_pad, S_pad, EP), stream_dtype)
    xp = xp.at[:B, :S, :E].set(x.astype(stream_dtype))
    maskp = jnp.zeros((B_pad, S_pad, 1), jnp.float32)
    maskp = maskp.at[:B, :S, 0].set(mask.astype(jnp.float32))
    w1p = jnp.zeros((EP, EP), stream_dtype).at[:E, :E].set(w1.astype(stream_dtype))
    b1p = jnp.zeros((1, EP), jnp.float32).at[0, :E].set(b1.astype(jnp.float32))
    w2p = jnp.zeros((EP, C), jnp.float32).at[:E, :].set(w2.astype(jnp.float32))
    b2p = b2.reshape(1, C).astype(jnp.float32)

    # Resident weights (constant index maps -> DMA'd once).  Single-buffer a
    # large w1 so its second buffer converts into a larger batch tile.
    w1_kwargs = {}
    if EP * EP * x_item >= _SINGLE_BUFFER_THRESHOLD:
        w1_kwargs["pipeline_mode"] = pl.Buffered(1)
    w1_spec = pl.BlockSpec((EP, EP), lambda g, t: (0, 0), **w1_kwargs)

    out = pl.pallas_call(
        cls_head_kernel,
        out_shape=jax.ShapeDtypeStruct((B_pad, C), jnp.float32),
        grid_spec=pltpu.PrefetchScalarGridSpec(
            num_scalar_prefetch=0,
            grid=(G, SG),
            in_specs=[
                pl.BlockSpec((TB, TS, EP), lambda g, t: (g, t, 0)),  # x
                pl.BlockSpec((TB, TS, 1), lambda g, t: (g, t, 0)),   # mask
                w1_spec,                                             # w1
                pl.BlockSpec((1, EP), lambda g, t: (0, 0)),          # b1
                pl.BlockSpec((EP, C), lambda g, t: (0, 0)),          # w2
                pl.BlockSpec((1, C), lambda g, t: (0, 0)),           # b2
            ],
            out_specs=pl.BlockSpec((TB, C), lambda g, t: (g, 0)),
            scratch_shapes=[pltpu.VMEM((TB, EP), jnp.float32)],
        ),
        compiler_params=pltpu.CompilerParams(
            dimension_semantics=("parallel", "arbitrary"),
            vmem_limit_bytes=int(vmem_limit_bytes),
        ),
    )(xp, maskp, w1p, b1p, w2p, b2p)

    return out[:B]


if __name__ == "__main__":
    # Small shapes consistent with the module: batch=4, seq=8, embedding_dim=32,
    # n_out=2.
    B, S, E, C = 4, 8, 32, 2
    key = jax.random.PRNGKey(0)
    kx, km, k1, k2, k3, k4 = jax.random.split(key, 6)

    x = jax.random.normal(kx, (B, S, E), dtype=jnp.float32)
    mask = (jax.random.uniform(km, (B, S)) > 0.3).astype(jnp.float32)

    # PyTorch Linear stores W as (out, in); transpose to (in, out) for x @ W.
    w1_torch = jax.random.normal(k1, (E, E), dtype=jnp.float32) * 0.1
    b1 = jax.random.normal(k2, (E,), dtype=jnp.float32) * 0.1
    w2_torch = jax.random.normal(k3, (C, E), dtype=jnp.float32) * 0.1
    b2 = jax.random.normal(k4, (C,), dtype=jnp.float32) * 0.1
    w1 = w1_torch.T
    w2 = w2_torch.T

    logits = classification_head(x, mask, w1, b1, w2, b2)
    logits = jax.block_until_ready(logits)

    # Pure-JAX reference on the same bf16-rounded streamed operands, with
    # HIGHEST-precision matmuls.  Tolerance covers the MXU f32-pass rounding of
    # the tiny final classifier matmul inside the kernel.
    hp = jax.lax.Precision.HIGHEST
    xq = x.astype(jnp.bfloat16).astype(jnp.float32)
    w1q = w1.astype(jnp.bfloat16).astype(jnp.float32)
    emb_ref = jnp.maximum(jnp.einsum("bse,ef->bsf", xq, w1q, precision=hp) + b1, 0.0)
    sum_ref = jnp.sum(emb_ref * mask[..., None], axis=1)
    logits_ref = jnp.dot(sum_ref, w2, precision=hp) + b2

    assert logits.shape == (B, C)
    assert jnp.allclose(logits, logits_ref, atol=1e-2, rtol=1e-2), (
        f"mismatch:\n{logits}\nvs\n{logits_ref}"
    )
    print("KERNEL_OK")
</pallas_src>

<mosaic_0001>
module attributes {stable_mosaic.version = 11 : i64} {
  func.func @cls_head_kernel(%arg0: i32, %arg1: i32, %arg2: memref<8x16x128xbf16, #tpu.memory_space<vmem>>, %arg3: memref<8x16x1xf32, #tpu.memory_space<vmem>>, %arg4: memref<128x128xbf16, #tpu.memory_space<vmem>>, %arg5: memref<1x128xf32, #tpu.memory_space<vmem>>, %arg6: memref<128x2xf32, #tpu.memory_space<vmem>>, %arg7: memref<1x2xf32, #tpu.memory_space<vmem>>, %arg8: memref<8x2xf32, #tpu.memory_space<vmem>>, %arg9: memref<8x128xf32, #tpu.memory_space<vmem>>) attributes {dimension_semantics = [#tpu.dimension_semantics<parallel>, #tpu.dimension_semantics<arbitrary>], iteration_bounds = array<i64: 1, 1>, scalar_prefetch = 0 : i64, scratch_operands = 1 : i64, tpu.core_type = #tpu.core_type<tc>, window_params = [{transform_indices = @transform_0, window_bounds = array<i64: 8, 16, 128>}, {transform_indices = @transform_1, window_bounds = array<i64: 8, 16, 1>}, {pipeline_mode = #tpu.pipeline_mode<synchronous>, transform_indices = @transform_2, window_bounds = array<i64: 128, 128>}, {pipeline_mode = #tpu.pipeline_mode<synchronous>, transform_indices = @transform_3, window_bounds = array<i64: 1, 128>}, {pipeline_mode = #tpu.pipeline_mode<synchronous>, transform_indices = @transform_4, window_bounds = array<i64: 128, 2>}, {pipeline_mode = #tpu.pipeline_mode<synchronous>, transform_indices = @transform_5, window_bounds = array<i64: 1, 2>}, {transform_indices = @transform_6, window_bounds = array<i64: 8, 2>}]} {
    %c0_i32 = arith.constant 0 : i32
    %0 = arith.cmpi eq, %arg1, %c0_i32 : i32
    %1 = arith.extui %0 : i1 to i32
    %c0_i32_0 = arith.constant 0 : i32
    %2 = arith.cmpi ne, %1, %c0_i32_0 : i32
    scf.if %2 {
      %cst_18 = arith.constant 0.000000e+00 : f32
      %23 = vector.broadcast %cst_18 : f32 to vector<8x128xf32>
      %c0_19 = arith.constant 0 : index
      %c0_20 = arith.constant 0 : index
      %24 = vector.load %arg9[%c0_19, %c0_20] : memref<8x128xf32, #tpu.memory_space<vmem>>, vector<8x128xf32>
      tpu.vector_store %arg9[%c0_19, %c0_20], %23 {strides = array<i32>} : memref<8x128xf32, #tpu.memory_space<vmem>>, vector<8x128xf32>,
    } else {
    }
    %c0 = arith.constant 0 : index
    %c0_1 = arith.constant 0 : index
    %c0_2 = arith.constant 0 : index
    %3 = vector.load %arg2[%c0, %c0_1, %c0_2] : memref<8x16x128xbf16, #tpu.memory_space<vmem>>, vector<8x16x128xbf16>
    %4 = vector.shape_cast %3 : vector<8x16x128xbf16> to vector<128x128xbf16>
    %c0_3 = arith.constant 0 : index
    %c0_4 = arith.constant 0 : index
    %5 = vector.load %arg4[%c0_3, %c0_4] : memref<128x128xbf16, #tpu.memory_space<vmem>>, vector<128x128xbf16>
    %cst = arith.constant dense<0.000000e+00> : vector<128x128xf32>
    %6 = tpu.matmul %4, %5, %cst {dimension_numbers = #tpu.dot_dimension_numbers<[1], [0], [0], [1], [0, 0, 1, 1], [], []>} : vector<128x128xbf16>, vector<128x128xbf16>, vector<128x128xf32> -> vector<128x128xf32>
    %c0_5 = arith.constant 0 : index
    %c0_6 = arith.constant 0 : index
    %7 = vector.load %arg5[%c0_5, %c0_6] : memref<1x128xf32, #tpu.memory_space<vmem>>, vector<1x128xf32>
    %8 = vector.broadcast %7 : vector<1x128xf32> to vector<128x128xf32>
    %9 = arith.addf %6, %8 : vector<128x128xf32>
    %cst_7 = arith.constant 0.000000e+00 : f32
    %10 = vector.broadcast %cst_7 : f32 to vector<128x128xf32>
    %11 = arith.maximumf %9, %10 : vector<128x128xf32>
    %12 = vector.shape_cast %11 : vector<128x128xf32> to vector<8x16x128xf32>
    %c0_8 = arith.constant 0 : index
    %c0_9 = arith.constant 0 : index
    %13 = vector.load %arg9[%c0_8, %c0_9] : memref<8x128xf32, #tpu.memory_space<vmem>>, vector<8x128xf32>
    %c0_10 = arith.constant 0 : index
    %c0_11 = arith.constant 0 : index
    %c0_12 = arith.constant 0 : index
    %14 = vector.load %arg3[%c0_10, %c0_11, %c0_12] : memref<8x16x1xf32, #tpu.memory_space<vmem>>, vector<8x16x1xf32>
    %15 = vector.broadcast %14 : vector<8x16x1xf32> to vector<8x16x128xf32>
    %16 = arith.mulf %12, %15 : vector<8x16x128xf32>
    %cst_13 = arith.constant dense<0.000000e+00> : vector<8x128xf32>
    %17 = vector.multi_reduction <add>, %16, %cst_13 [1] : vector<8x16x128xf32> to vector<8x128xf32>
    %18 = arith.addf %13, %17 : vector<8x128xf32>
    %c0_14 = arith.constant 0 : index
    %c0_15 = arith.constant 0 : index
    %19 = vector.load %arg9[%c0_14, %c0_15] : memref<8x128xf32, #tpu.memory_space<vmem>>, vector<8x128xf32>
    tpu.vector_store %arg9[%c0_14, %c0_15], %18 {strides = array<i32>} : memref<8x128xf32, #tpu.memory_space<vmem>>, vector<8x128xf32>,
    %c0_i32_16 = arith.constant 0 : i32
    %20 = arith.cmpi eq, %arg1, %c0_i32_16 : i32
    %21 = arith.extui %20 : i1 to i32
    %c0_i32_17 = arith.constant 0 : i32
    %22 = arith.cmpi ne, %21, %c0_i32_17 : i32
    scf.if %22 {
      %c0_18 = arith.constant 0 : index
      %c0_19 = arith.constant 0 : index
      %23 = vector.load %arg9[%c0_18, %c0_19] : memref<8x128xf32, #tpu.memory_space<vmem>>, vector<8x128xf32>
      %c0_20 = arith.constant 0 : index
      %c0_21 = arith.constant 0 : index
      %24 = vector.load %arg6[%c0_20, %c0_21] : memref<128x2xf32, #tpu.memory_space<vmem>>, vector<128x2xf32>
      %cst_22 = arith.constant dense<0.000000e+00> : vector<8x2xf32>
      %25 = tpu.matmul %23, %24, %cst_22 {dimension_numbers = #tpu.dot_dimension_numbers<[1], [0], [0], [1], [0, 0, 1, 1], [], []>} : vector<8x128xf32>, vector<128x2xf32>, vector<8x2xf32> -> vector<8x2xf32>
      %c0_23 = arith.constant 0 : index
      %c0_24 = arith.constant 0 : index
      %26 = vector.load %arg7[%c0_23, %c0_24] : memref<1x2xf32, #tpu.memory_space<vmem>>, vector<1x2xf32>
      %27 = vector.broadcast %26 : vector<1x2xf32> to vector<8x2xf32>
      %28 = arith.addf %25, %27 : vector<8x2xf32>
      %c0_25 = arith.constant 0 : index
      %c0_26 = arith.constant 0 : index
      %29 = vector.load %arg8[%c0_25, %c0_26] : memref<8x2xf32, #tpu.memory_space<vmem>>, vector<8x2xf32>
      tpu.vector_store %arg8[%c0_25, %c0_26], %28 {strides = array<i32>} : memref<8x2xf32, #tpu.memory_space<vmem>>, vector<8x2xf32>,
    } else {
    }
    return
  }
  func.func @transform_0(%arg0: i32, %arg1: i32) -> (i32, i32, i32) {
    %c0_i32 = arith.constant 0 : i32
    %c0_i32_0 = arith.constant 0 : i32
    return %arg0, %arg1, %c0_i32 : i32, i32, i32
  }
  func.func @transform_1(%arg0: i32, %arg1: i32) -> (i32, i32, i32) {
    %c0_i32 = arith.constant 0 : i32
    %c0_i32_0 = arith.constant 0 : i32
    return %arg0, %arg1, %c0_i32 : i32, i32, i32
  }
  func.func @transform_2(%arg0: i32, %arg1: i32) -> (i32, i32) {
    %c0_i32 = arith.constant 0 : i32
    %c0_i32_0 = arith.constant 0 : i32
    %c0_i32_1 = arith.constant 0 : i32
    return %c0_i32, %c0_i32_0 : i32, i32
  }
  func.func @transform_3(%arg0: i32, %arg1: i32) -> (i32, i32) {
    %c0_i32 = arith.constant 0 : i32
    %c0_i32_0 = arith.constant 0 : i32
    %c0_i32_1 = arith.constant 0 : i32
    return %c0_i32, %c0_i32_0 : i32, i32
  }
  func.func @transform_4(%arg0: i32, %arg1: i32) -> (i32, i32) {
    %c0_i32 = arith.constant 0 : i32
    %c0_i32_0 = arith.constant 0 : i32
    %c0_i32_1 = arith.constant 0 : i32
    return %c0_i32, %c0_i32_0 : i32, i32
  }
  func.func @transform_5(%arg0: i32, %arg1: i32) -> (i32, i32) {
    %c0_i32 = arith.constant 0 : i32
    %c0_i32_0 = arith.constant 0 : i32
    %c0_i32_1 = arith.constant 0 : i32
    return %c0_i32, %c0_i32_0 : i32, i32
  }
  func.func @transform_6(%arg0: i32, %arg1: i32) -> (i32, i32) {
    %c0_i32 = arith.constant 0 : i32
    %c0_i32_0 = arith.constant 0 : i32
    return %arg0, %c0_i32 : i32, i32
  }
}

</mosaic_0001>

<llo_original>
// kernel: tpu_custom_call.1
$region0: #{tpu_custom_call.1}
  #allocation0 [shape = 'u32[]', space=smem, size = 0x4, offset = 0x4, fixed_abs, tag = 'smem constant byte address 0x4 - core index']
  #allocation1 [shape = 'u32[144,128]{1,0:T(1,128)}', space=vmem, size = 0x12000, scoped, tag = 'internal scratch']
  #allocation2 [shape = 'f32[8,128]{1,0:T(8,128)}', space=vmem, size = 0x1000, scoped, tag = 'scratch operand']
  %s0 = inlined_call_operand.vmem [shape: bf16[8,16,128], index: 0, kind: input, shape index: {}]
  %s1 = inlined_call_operand.vmem [shape: f32[8,16,1], index: 1, kind: input, shape index: {}]
  %s2 = inlined_call_operand.vmem [shape: bf16[128,128], index: 2, kind: input, shape index: {}]
  %s3 = inlined_call_operand.vmem [shape: f32[1,128], index: 3, kind: input, shape index: {}]
  %s4 = inlined_call_operand.vmem [shape: f32[128,2], index: 4, kind: input, shape index: {}]
  %s5 = inlined_call_operand.vmem [shape: f32[1,2], index: 5, kind: input, shape index: {}]
  %s6 = inlined_call_operand.vmem [shape: f32[8,2], index: 6, kind: output, shape index: {}]
  %s7 = sld [smem:[#allocation0]]
  $region42: #{tpu_custom_call.1} parent=0
    _
  %s9 = ssub.s32 1, %s7
  %s10 = scalar_select 0, %s9, %s7
  // Predicated region
  $region2: #{tpu_custom_call.1} parent=0 // pred_check
    _
  $region3: #{tpu_custom_call.1} parent=0 // pred_check_branch
    %12 = sbr.rel (0) target = $region5
  $region4: #{tpu_custom_call.1} parent=0 // pred_region
    _
  $region5: #{tpu_custom_call.1} parent=0 // pred_fallthru
    _
  // Predicated region
  $region6: #{tpu_custom_call.1} parent=0 // pred_check
    _
  $region7: #{tpu_custom_call.1} parent=0 // pred_check_branch
    %14 = sbr.rel (0) target = $region9
  $region8: #{tpu_custom_call.1} parent=0 // pred_region
    _
  $region9: #{tpu_custom_call.1} parent=0 // pred_fallthru
    _
  // Predicated region
  $region10: #{tpu_custom_call.1} parent=0 // pred_check
    _
  $region11: #{tpu_custom_call.1} parent=0 // pred_check_branch
    %16 = sbr.rel (0) target = $region13
  $region12: #{tpu_custom_call.1} parent=0 // pred_region
    _
  $region13: #{tpu_custom_call.1} parent=0 // pred_fallthru
    _
  // Predicated region
  $region14: #{tpu_custom_call.1} parent=0 // pred_check
    _
  $region15: #{tpu_custom_call.1} parent=0 // pred_check_branch
    %18 = sbr.rel (0) target = $region17
  $region16: #{tpu_custom_call.1} parent=0 // pred_region
    _
  $region17: #{tpu_custom_call.1} parent=0 // pred_fallthru
    _
  // Predicated region
  $region18: #{tpu_custom_call.1} parent=0 // pred_check
    _
  $region19: #{tpu_custom_call.1} parent=0 // pred_check_branch
    %20 = sbr.rel (0) target = $region21
  $region20: #{tpu_custom_call.1} parent=0 // pred_region
    _
  $region21: #{tpu_custom_call.1} parent=0 // pred_fallthru
    _
  // Predicated region
  $region22: #{tpu_custom_call.1} parent=0 // pred_check
    _
  $region23: #{tpu_custom_call.1} parent=0 // pred_check_branch
    %22 = sbr.rel (0) target = $region25
  $region24: #{tpu_custom_call.1} parent=0 // pred_region
    _
  $region25: #{tpu_custom_call.1} parent=0 // pred_fallthru
    _
  %p24 = scmp.eq.s32.totalorder 0, 0
  // Predicated region
  $region26: #{tpu_custom_call.1} parent=0 // pred_check
    %p25 = pneg %p24
  $region27: #{tpu_custom_call.1} parent=0 // pred_check_branch
    %27 = sbr.rel (%p25) target = $region29
  $region28: #{tpu_custom_call.1} parent=0 // pred_region
    %28 = vst [vmem:[#allocation2] sm:$0xff] 0.0
  $region29: #{tpu_custom_call.1} parent=0 // pred_fallthru
    _
  %v29 = vld [vmem:[%s0] sm:$0xf]
  %v30 = vld [vmem:[%s0 + $0x4] sm:$0xf]
  %v31 = vld [vmem:[%s0 + $0x8] sm:$0xf]
  %v32 = vld [vmem:[%s0 + $0xc] sm:$0xf]
  %v33 = vld [vmem:[%s0 + $0x10] sm:$0xf]
  %v34 = vld [vmem:[%s0 + $0x14] sm:$0xf]
  %v35 = vld [vmem:[%s0 + $0x18] sm:$0xf]
  %v36 = vld [vmem:[%s0 + $0x1c] sm:$0xf]
  %v37 = vld [vmem:[%s0 + $0x20] sm:$0xf]
  %v38 = vld [vmem:[%s0 + $0x24] sm:$0xf]
  %v39 = vld [vmem:[%s0 + $0x28] sm:$0xf]
  %v40 = vld [vmem:[%s0 + $0x2c] sm:$0xf]
  %v41 = vld [vmem:[%s0 + $0x30] sm:$0xf]
  %v42 = vld [vmem:[%s0 + $0x34] sm:$0xf]
  %v43 = vld [vmem:[%s0 + $0x38] sm:$0xf]
  %v44 = vld [vmem:[%s0 + $0x3c] sm:$0xf]
  %v45 = vld [vmem:[%s2] sm:$0xf]
  %v46 = vld [vmem:[%s2 + $0x4] sm:$0xf]
  %v47 = vld [vmem:[%s2 + $0x8] sm:$0xf]
  %v48 = vld [vmem:[%s2 + $0xc] sm:$0xf]
  %v49 = vld [vmem:[%s2 + $0x10] sm:$0xf]
  %v50 = vld [vmem:[%s2 + $0x14] sm:$0xf]
  %v51 = vld [vmem:[%s2 + $0x18] sm:$0xf]
  %v52 = vld [vmem:[%s2 + $0x1c] sm:$0xf]
  %v53 = vld [vmem:[%s2 + $0x20] sm:$0xf]
  %v54 = vld [vmem:[%s2 + $0x24] sm:$0xf]
  %v55 = vld [vmem:[%s2 + $0x28] sm:$0xf]
  %v56 = vld [vmem:[%s2 + $0x2c] sm:$0xf]
  %v57 = vld [vmem:[%s2 + $0x30] sm:$0xf]
  %v58 = vld [vmem:[%s2 + $0x34] sm:$0xf]
  %v59 = vld [vmem:[%s2 + $0x38] sm:$0xf]
  %v60 = vld [vmem:[%s2 + $0x3c] sm:$0xf]
  %v61 = vld [vmem:[%s3] sm:$0x1]
  %v63 = vlaneseq
  %v64 = vshrl.u32 %v63, 7
  %v65 = vsub.s32 0, %v64
  %v66 = vrot.slane %v61, %v65
  %v84 = vunpack.c.l.b16 %v29
  %v85 = vunpack.c.l.b16 %v30
  %v86 = vunpack.c.l.b16 %v31
  %v87 = vunpack.c.l.b16 %v32
  %v88 = vunpack.c.l.b16 %v33
  %v89 = vunpack.c.l.b16 %v34
  %v90 = vunpack.c.l.b16 %v35
  %v91 = vunpack.c.l.b16 %v36
  %v92 = vunpack.c.l.b16 %v37
  %v93 = vunpack.c.l.b16 %v38
  %v94 = vunpack.c.l.b16 %v39
  %v95 = vunpack.c.l.b16 %v40
  %v96 = vunpack.c.l.b16 %v41
  %v97 = vunpack.c.l.b16 %v42
  %v98 = vunpack.c.l.b16 %v43
  %v99 = vunpack.c.l.b16 %v44
  %v100 = vpack.c.b16 %v85, %v84
  %v101 = vpack.c.b16 %v87, %v86
  %v102 = vpack.c.b16 %v89, %v88
  %v103 = vpack.c.b16 %v91, %v90
  %v104 = vpack.c.b16 %v93, %v92
  %v105 = vpack.c.b16 %v95, %v94
  %v106 = vpack.c.b16 %v97, %v96
  %v107 = vpack.c.b16 %v99, %v98
  %v132 = vunpack.c.l.b16 %v45
  %v133 = vunpack.c.l.b16 %v46
  %v134 = vunpack.c.l.b16 %v47
  %v135 = vunpack.c.l.b16 %v48
  %v136 = vunpack.c.l.b16 %v49
  %v137 = vunpack.c.l.b16 %v50
  %v138 = vunpack.c.l.b16 %v51
  %v139 = vunpack.c.l.b16 %v52
  %v140 = vunpack.c.l.b16 %v53
  %v141 = vunpack.c.l.b16 %v54
  %v142 = vunpack.c.l.b16 %v55
  %v143 = vunpack.c.l.b16 %v56
  %v144 = vunpack.c.l.b16 %v57
  %v145 = vunpack.c.l.b16 %v58
  %v146 = vunpack.c.l.b16 %v59
  %v147 = vunpack.c.l.b16 %v60
  %v148 = vpack.c.b16 %v133, %v132
  %v149 = vpack.c.b16 %v135, %v134
  %v150 = vpack.c.b16 %v137, %v136
  %v151 = vpack.c.b16 %v139, %v138
  %v152 = vpack.c.b16 %v141, %v140
  %v153 = vpack.c.b16 %v143, %v142
  %v154 = vpack.c.b16 %v145, %v144
  %v155 = vpack.c.b16 %v147, %v146
  %164 = vmatprep.subr.bf16.mxu0 0
  %165 = vmatpush1.bf16.msra.mxu0 %v148
  %166 = vmatprep.subr.bf16.mxu0 0
  %167 = vmatpush1.bf16.msra.mxu0 %v149
  %168 = vmatprep.subr.bf16.mxu0 0
  %169 = vmatpush1.bf16.msra.mxu0 %v150
  %170 = vmatprep.subr.bf16.mxu0 0
  %171 = vmatpush1.bf16.msra.mxu0 %v151
  %172 = vmatprep.subr.bf16.mxu0 0
  %173 = vmatpush1.bf16.msra.mxu0 %v152
  %174 = vmatprep.subr.bf16.mxu0 0
  %175 = vmatpush1.bf16.msra.mxu0 %v153
  %176 = vmatprep.subr.bf16.mxu0 0
  %177 = vmatpush1.bf16.msra.mxu0 %v154
  %178 = vmatprep.subr.bf16.mxu0 0
  %179 = vmatpush1.bf16.msra.mxu0 %v155
  %180 = vmatprep.subr.bf16.mxu0 0
  %181 = vmatpush1.bf16.msra.mxu0 0
  %182 = vmatprep.subr.bf16.mxu0 0
  %183 = vmatpush1.bf16.msra.mxu0 0
  %184 = vmatprep.subr.bf16.mxu0 0
  %185 = vmatpush1.bf16.msra.mxu0 0
  %186 = vmatprep.subr.bf16.mxu0 0
  %187 = vmatpush1.bf16.msra.mxu0 0
  %188 = vmatprep.subr.bf16.mxu0 0
  %189 = vmatpush1.bf16.msra.mxu0 0
  %190 = vmatprep.subr.bf16.mxu0 0
  %191 = vmatpush1.bf16.msra.mxu0 0
  %192 = vmatprep.subr.bf16.mxu0 0
  %193 = vmatpush1.bf16.msra.mxu0 0
  %194 = vmatprep.subr.bf16.mxu0 0
  %195 = vmatpush1.bf16.msra.mxu0 0
  %196 = vmatprep.mubr.bf16.mxu0 0
  %197 = vmatmul.mubr.bf16.gmra.mrb[0].mxu0 %v100
  %v198 = vpop.f32.mrb[0].mxu0
  %v199 = vadd.f32 %v66, %v198
  %v200 = vpop.f32.mrb[0].mxu0
  %v201 = vpop.f32.mrb[0].mxu0
  %v202 = vadd.f32 %v66, %v201
  %v203 = vpop.f32.mrb[0].mxu0
  %204 = vmatprep.mubr.bf16.mxu0 0
  %205 = vmatmul.mubr.bf16.gmra.mrb[0].mxu0 %v101
  %v206 = vpop.f32.mrb[0].mxu0
  %v207 = vadd.f32 %v66, %v206
  %v208 = vpop.f32.mrb[0].mxu0
  %v209 = vpop.f32.mrb[0].mxu0
  %v210 = vadd.f32 %v66, %v209
  %v211 = vpop.f32.mrb[0].mxu0
  %212 = vmatprep.mubr.bf16.mxu0 0
  %213 = vmatmul.mubr.bf16.gmra.mrb[0].mxu0 %v102
  %v214 = vpop.f32.mrb[0].mxu0
  %v215 = vadd.f32 %v66, %v214
  %v216 = vpop.f32.mrb[0].mxu0
  %v217 = vpop.f32.mrb[0].mxu0
  %v218 = vadd.f32 %v66, %v217
  %v219 = vpop.f32.mrb[0].mxu0
  %220 = vmatprep.mubr.bf16.mxu0 0
  %221 = vmatmul.mubr.bf16.gmra.mrb[0].mxu0 %v103
  %v222 = vpop.f32.mrb[0].mxu0
  %v223 = vadd.f32 %v66, %v222
  %v224 = vpop.f32.mrb[0].mxu0
  %v225 = vpop.f32.mrb[0].mxu0
  %v226 = vadd.f32 %v66, %v225
  %v227 = vpop.f32.mrb[0].mxu0
  %228 = vmatprep.mubr.bf16.mxu0 0
  %229 = vmatmul.mubr.bf16.gmra.mrb[0].mxu0 %v104
  %v230 = vpop.f32.mrb[0].mxu0
  %v231 = vadd.f32 %v66, %v230
  %v232 = vpop.f32.mrb[0].mxu0
  %v233 = vpop.f32.mrb[0].mxu0
  %v234 = vadd.f32 %v66, %v233
  %v235 = vpop.f32.mrb[0].mxu0
  %236 = vmatprep.mubr.bf16.mxu0 0
  %237 = vmatmul.mubr.bf16.gmra.mrb[0].mxu0 %v105
  %v238 = vpop.f32.mrb[0].mxu0
  %v239 = vadd.f32 %v66, %v238
  %v240 = vpop.f32.mrb[0].mxu0
  %v241 = vpop.f32.mrb[0].mxu0
  %v242 = vadd.f32 %v66, %v241
  %v243 = vpop.f32.mrb[0].mxu0
  %244 = vmatprep.mubr.bf16.mxu0 0
  %245 = vmatmul.mubr.bf16.gmra.mrb[0].mxu0 %v106
  %v246 = vpop.f32.mrb[0].mxu0
  %v247 = vadd.f32 %v66, %v246
  %v248 = vpop.f32.mrb[0].mxu0
  %v249 = vpop.f32.mrb[0].mxu0
  %v250 = vadd.f32 %v66, %v249
  %v251 = vpop.f32.mrb[0].mxu0
  %252 = vmatprep.mubr.bf16.mxu0 0
  %253 = vmatmul.mubr.bf16.gmra.mrb[0].mxu0 %v107
  %v254 = vpop.f32.mrb[0].mxu0
  %v255 = vadd.f32 %v66, %v254
  %v256 = vpop.f32.mrb[0].mxu0
  %v257 = vpop.f32.mrb[0].mxu0
  %v258 = vadd.f32 %v66, %v257
  %v259 = vpop.f32.mrb[0].mxu0
  %260 = vdwg.mxu0
  %v261 = vmax.f32 %v199, 0.0
  %v262 = vmax.f32 %v202, 0.0
  %v263 = vmax.f32 %v207, 0.0
  %v264 = vmax.f32 %v210, 0.0
  %v265 = vmax.f32 %v215, 0.0
  %v266 = vmax.f32 %v218, 0.0
  %v267 = vmax.f32 %v223, 0.0
  %v268 = vmax.f32 %v226, 0.0
  %v269 = vmax.f32 %v231, 0.0
  %v270 = vmax.f32 %v234, 0.0
  %v271 = vmax.f32 %v239, 0.0
  %v272 = vmax.f32 %v242, 0.0
  %v273 = vmax.f32 %v247, 0.0
  %v274 = vmax.f32 %v250, 0.0
  %v275 = vmax.f32 %v255, 0.0
  %v276 = vmax.f32 %v258, 0.0
  %v277 = vld [vmem:[#allocation2] sm:$0xff]
  %v278 = vld [vmem:[%s1] sm:$0xff]
  %v279 = vld [vmem:[%s1 + $0x8] sm:$0xff]
  %v280 = vld [vmem:[%s1 + $0x10] sm:$0xff]
  %v281 = vld [vmem:[%s1 + $0x18] sm:$0xff]
  %v282 = vld [vmem:[%s1 + $0x20] sm:$0xff]
  %v283 = vld [vmem:[%s1 + $0x28] sm:$0xff]
  %v284 = vld [vmem:[%s1 + $0x30] sm:$0xff]
  %v285 = vld [vmem:[%s1 + $0x38] sm:$0xff]
  %v286 = vld [vmem:[%s1 + $0x40] sm:$0xff]
  %v287 = vld [vmem:[%s1 + $0x48] sm:$0xff]
  %v288 = vld [vmem:[%s1 + $0x50] sm:$0xff]
  %v289 = vld [vmem:[%s1 + $0x58] sm:$0xff]
  %v290 = vld [vmem:[%s1 + $0x60] sm:$0xff]
  %v291 = vld [vmem:[%s1 + $0x68] sm:$0xff]
  %v292 = vld [vmem:[%s1 + $0x70] sm:$0xff]
  %v293 = vld [vmem:[%s1 + $0x78] sm:$0xff]
  %295 = vset.pattern.permute.xlu0 0
  %296 = vperm.xlu0 %295, %v278
  %v297 = vpop.permute.xlu0 %296
  %300 = vset.pattern.permute.xlu0 0
  %301 = vperm.xlu0 %300, %v279
  %v302 = vpop.permute.xlu0 %301
  %305 = vset.pattern.permute.xlu0 0
  %306 = vperm.xlu0 %305, %v280
  %v307 = vpop.permute.xlu0 %306
  %310 = vset.pattern.permute.xlu0 0
  %311 = vperm.xlu0 %310, %v281
  %v312 = vpop.permute.xlu0 %311
  %315 = vset.pattern.permute.xlu0 0
  %316 = vperm.xlu0 %315, %v282
  %v317 = vpop.permute.xlu0 %316
  %320 = vset.pattern.permute.xlu0 0
  %321 = vperm.xlu0 %320, %v283
  %v322 = vpop.permute.xlu0 %321
  %325 = vset.pattern.permute.xlu0 0
  %326 = vperm.xlu0 %325, %v284
  %v327 = vpop.permute.xlu0 %326
  %330 = vset.pattern.permute.xlu0 0
  %331 = vperm.xlu0 %330, %v285
  %v332 = vpop.permute.xlu0 %331
  %335 = vset.pattern.permute.xlu0 0
  %336 = vperm.xlu0 %335, %v286
  %v337 = vpop.permute.xlu0 %336
  %340 = vset.pattern.permute.xlu0 0
  %341 = vperm.xlu0 %340, %v287
  %v342 = vpop.permute.xlu0 %341
  %345 = vset.pattern.permute.xlu0 0
  %346 = vperm.xlu0 %345, %v288
  %v347 = vpop.permute.xlu0 %346
  %350 = vset.pattern.permute.xlu0 0
  %351 = vperm.xlu0 %350, %v289
  %v352 = vpop.permute.xlu0 %351
  %355 = vset.pattern.permute.xlu0 0
  %356 = vperm.xlu0 %355, %v290
  %v357 = vpop.permute.xlu0 %356
  %360 = vset.pattern.permute.xlu0 0
  %361 = vperm.xlu0 %360, %v291
  %v362 = vpop.permute.xlu0 %361
  %365 = vset.pattern.permute.xlu0 0
  %366 = vperm.xlu0 %365, %v292
  %v367 = vpop.permute.xlu0 %366
  %370 = vset.pattern.permute.xlu0 0
  %371 = vperm.xlu0 %370, %v293
  %v372 = vpop.permute.xlu0 %371
  %v374 = vmul.f32 %v261, %v297
  %v375 = vmul.f32 %v262, %v302
  %v376 = vmul.f32 %v263, %v307
  %v377 = vmul.f32 %v264, %v312
  %v378 = vmul.f32 %v265, %v317
  %v379 = vmul.f32 %v266, %v322
  %v380 = vmul.f32 %v267, %v327
  %v381 = vmul.f32 %v268, %v332
  %v382 = vmul.f32 %v269, %v337
  %v383 = vmul.f32 %v270, %v342
  %v384 = vmul.f32 %v271, %v347
  %v385 = vmul.f32 %v272, %v352
  %v386 = vmul.f32 %v273, %v357
  %v387 = vmul.f32 %v274, %v362
  %v388 = vmul.f32 %v275, %v367
  %v389 = vmul.f32 %v276, %v372
  %v390 = vadd.f32 %v374, %v375
  %v391 = vrot.slane %v390, 4
  %v392 = vadd.f32 %v390, %v391
  %v393 = vrot.slane %v392, 2
  %v394 = vadd.f32 %v392, %v393
  %v395 = vrot.slane %v394, 1
  %v396 = vadd.f32 %v394, %v395
  %v397 = vadd.f32 %v376, %v377
  %v398 = vrot.slane %v397, 4
  %v399 = vadd.f32 %v397, %v398
  %v400 = vrot.slane %v399, 2
  %v401 = vadd.f32 %v399, %v400
  %v402 = vrot.slane %v401, 1
  %v403 = vadd.f32 %v401, %v402
  %v404 = vadd.f32 %v378, %v379
  %v405 = vrot.slane %v404, 4
  %v406 = vadd.f32 %v404, %v405
  %v407 = vrot.slane %v406, 2
  %v408 = vadd.f32 %v406, %v407
  %v409 = vrot.slane %v408, 1
  %v410 = vadd.f32 %v408, %v409
  %v411 = vadd.f32 %v380, %v381
  %v412 = vrot.slane %v411, 4
  %v413 = vadd.f32 %v411, %v412
  %v414 = vrot.slane %v413, 2
  %v415 = vadd.f32 %v413, %v414
  %v416 = vrot.slane %v415, 1
  %v417 = vadd.f32 %v415, %v416
  %v418 = vadd.f32 %v382, %v383
  %v419 = vrot.slane %v418, 4
  %v420 = vadd.f32 %v418, %v419
  %v421 = vrot.slane %v420, 2
  %v422 = vadd.f32 %v420, %v421
  %v423 = vrot.slane %v422, 1
  %v424 = vadd.f32 %v422, %v423
  %v425 = vadd.f32 %v384, %v385
  %v426 = vrot.slane %v425, 4
  %v427 = vadd.f32 %v425, %v426
  %v428 = vrot.slane %v427, 2
  %v429 = vadd.f32 %v427, %v428
  %v430 = vrot.slane %v429, 1
  %v431 = vadd.f32 %v429, %v430
  %v432 = vadd.f32 %v386, %v387
  %v433 = vrot.slane %v432, 4
  %v434 = vadd.f32 %v432, %v433
  %v435 = vrot.slane %v434, 2
  %v436 = vadd.f32 %v434, %v435
  %v437 = vrot.slane %v436, 1
  %v438 = vadd.f32 %v436, %v437
  %v439 = vadd.f32 %v388, %v389
  %v440 = vrot.slane %v439, 4
  %v441 = vadd.f32 %v439, %v440
  %v442 = vrot.slane %v441, 2
  %v443 = vadd.f32 %v441, %v442
  %v444 = vrot.slane %v443, 1
  %v445 = vadd.f32 %v443, %v444
  %vm454 = vcmask 1041409
  %v455 = vsel %vm454, %v403, %v396
  %vm456 = vcmask 1042434
  %v457 = vsel %vm456, %v410, %v455
  %vm458 = vcmask 1043459
  %v459 = vsel %vm458, %v417, %v457
  %vm460 = vcmask 1044484
  %v461 = vsel %vm460, %v424, %v459
  %vm462 = vcmask 1045509
  %v463 = vsel %vm462, %v431, %v461
  %vm464 = vcmask 1046534
  %v465 = vsel %vm464, %v438, %v463
  %vm466 = vcmask 1047559
  %v467 = vsel %vm466, %v445, %v465
  %v469 = vadd.f32 %v277, %v467
  %470 = vst [vmem:[#allocation2] sm:$0xff] %v469
  // Predicated region
  $region30: #{tpu_custom_call.1} parent=0 // pred_check
    %p471 = pneg %p24
  $region31: #{tpu_custom_call.1} parent=0 // pred_check_branch
    %473 = sbr.rel (%p471) target = $region33
  $region32: #{tpu_custom_call.1} parent=0 // pred_region
    %v474 = vld [vmem:[#allocation2] sm:$0xff]
    %v475 = vld [vmem:[%s4] sm:$0xff]
    %v476 = vld [vmem:[%s4 + $0x8] sm:$0xff]
    %v477 = vld [vmem:[%s4 + $0x10] sm:$0xff]
    %v478 = vld [vmem:[%s4 + $0x18] sm:$0xff]
    %v479 = vld [vmem:[%s4 + $0x20] sm:$0xff]
    %v480 = vld [vmem:[%s4 + $0x28] sm:$0xff]
    %v481 = vld [vmem:[%s4 + $0x30] sm:$0xff]
    %v482 = vld [vmem:[%s4 + $0x38] sm:$0xff]
    %v483 = vld [vmem:[%s4 + $0x40] sm:$0xff]
    %v484 = vld [vmem:[%s4 + $0x48] sm:$0xff]
    %v485 = vld [vmem:[%s4 + $0x50] sm:$0xff]
    %v486 = vld [vmem:[%s4 + $0x58] sm:$0xff]
    %v487 = vld [vmem:[%s4 + $0x60] sm:$0xff]
    %v488 = vld [vmem:[%s4 + $0x68] sm:$0xff]
    %v489 = vld [vmem:[%s4 + $0x70] sm:$0xff]
    %v490 = vld [vmem:[%s4 + $0x78] sm:$0xff]
    %v491 = vld [vmem:[%s5] sm:$0x1]
    %v493 = vlaneseq
    %v494 = vshrl.u32 %v493, 7
    %v495 = vsub.s32 0, %v494
    %v496 = vrot.slane %v491, %v495
    %498 = vmatprep.subr.mxu0 0.0
    %499 = vmatpush1.msra.mxu0 %v475
    %500 = vmatprep.subr.mxu0 0.0
    %501 = vmatpush1.msra.mxu0 %v476
    %502 = vmatprep.subr.mxu0 0.0
    %503 = vmatpush1.msra.mxu0 %v477
    %504 = vmatprep.subr.mxu0 0.0
    %505 = vmatpush1.msra.mxu0 %v478
    %506 = vmatprep.subr.mxu0 0.0
    %507 = vmatpush1.msra.mxu0 %v479
    %508 = vmatprep.subr.mxu0 0.0
    %509 = vmatpush1.msra.mxu0 %v480
    %510 = vmatprep.subr.mxu0 0.0
    %511 = vmatpush1.msra.mxu0 %v481
    %512 = vmatprep.subr.mxu0 0.0
    %513 = vmatpush1.msra.mxu0 %v482
    %514 = vmatprep.subr.mxu0 0.0
    %515 = vmatpush1.msra.mxu0 %v483
    %516 = vmatprep.subr.mxu0 0.0
    %517 = vmatpush1.msra.mxu0 %v484
    %518 = vmatprep.subr.mxu0 0.0
    %519 = vmatpush1.msra.mxu0 %v485
    %520 = vmatprep.subr.mxu0 0.0
    %521 = vmatpush1.msra.mxu0 %v486
    %522 = vmatprep.subr.mxu0 0.0
    %523 = vmatpush1.msra.mxu0 %v487
    %524 = vmatprep.subr.mxu0 0.0
    %525 = vmatpush1.msra.mxu0 %v488
    %526 = vmatprep.subr.mxu0 0.0
    %527 = vmatpush1.msra.mxu0 %v489
    %528 = vmatprep.subr.mxu0 0.0
    %529 = vmatpush1.msra.mxu0 %v490
    %530 = vmatprep.subr.mxu0 0.0
    %531 = vmatpush1.msra.mxu0 0.0
    %532 = vmatprep.subr.mxu0 0.0
    %533 = vmatpush1.msra.mxu0 0.0
    %534 = vmatprep.subr.mxu0 0.0
    %535 = vmatpush1.msra.mxu0 0.0
    %536 = vmatprep.subr.mxu0 0.0
    %537 = vmatpush1.msra.mxu0 0.0
    %538 = vmatprep.subr.mxu0 0.0
    %539 = vmatpush1.msra.mxu0 0.0
    %540 = vmatprep.subr.mxu0 0.0
    %541 = vmatpush1.msra.mxu0 0.0
    %542 = vmatprep.subr.mxu0 0.0
    %543 = vmatpush1.msra.mxu0 0.0
    %544 = vmatprep.subr.mxu0 0.0
    %545 = vmatpush1.msra.mxu0 0.0
    %546 = vmatprep.subr.mxu0 0.0
    %547 = vmatpush1.msra.mxu0 0.0
    %548 = vmatprep.subr.mxu0 0.0
    %549 = vmatpush1.msra.mxu0 0.0
    %550 = vmatprep.subr.mxu0 0.0
    %551 = vmatpush1.msra.mxu0 0.0
    %552 = vmatprep.subr.mxu0 0.0
    %553 = vmatpush1.msra.mxu0 0.0
    %554 = vmatprep.subr.mxu0 0.0
    %555 = vmatpush1.msra.mxu0 0.0
    %556 = vmatprep.subr.mxu0 0.0
    %557 = vmatpush1.msra.mxu0 0.0
    %558 = vmatprep.subr.mxu0 0.0
    %559 = vmatpush1.msra.mxu0 0.0
    %560 = vmatprep.subr.mxu0 0.0
    %561 = vmatpush1.msra.mxu0 0.0
    %562 = vmatprep.mubr.f32.mxu0 0.0
    %563 = vmatmul.mubr.f32.gmra.mrb[0].mxu0 %v474
    %v564 = vpop.f32.mrb[0].mxu0
    %v565 = vadd.f32 %v496, %v564
    %v566 = vpop.f32.mrb[0].mxu0
    %567 = vdwg.mxu0
    %vm568 = vcmask 15360
    %569 = vst.msk [vmem:[%s6] sm:$0xff] %vm568, %v565
  $region33: #{tpu_custom_call.1} parent=0 // pred_fallthru
    _
  // Predicated region
  $region34: #{tpu_custom_call.1} parent=0 // pred_check
    _
  $region35: #{tpu_custom_call.1} parent=0 // pred_check_branch
    %571 = sbr.rel (0) target = $region37
  $region36: #{tpu_custom_call.1} parent=0 // pred_region
    _
  $region37: #{tpu_custom_call.1} parent=0 // pred_fallthru
    _
  // Predicated region
  $region38: #{tpu_custom_call.1} parent=0 // pred_check
    _
  $region39: #{tpu_custom_call.1} parent=0 // pred_check_branch
    %573 = sbr.rel (0) target = $region41
  $region40: #{tpu_custom_call.1} parent=0 // pred_region
    _
  $region41: #{tpu_custom_call.1} parent=0 // pred_fallthru
    _

</llo_original>
